<compile_context>
chip_gen: v6e
topology: v6e:2x2x1
jax: 0.10.0
libtpu: 0.0.40
codegen_flags: <defaults>
</compile_context>

<pallas_src>
import jax
import jax.numpy as jnp
from jax import lax
from jax.experimental import pallas as pl
from jax.experimental.pallas import tpu as pltpu


_SQRT_2_OVER_PI = 0.7978845608028654


def _gelu_tanh(x):
    # torch.nn.GELU(approximate='tanh'); the tanh goes to the EUP slot.
    return 0.5 * x * (1.0 + jnp.tanh(_SQRT_2_OVER_PI * (x + 0.044715 * x * x * x)))


def _gelu_exact(x):
    # torch.nn.GELU(approximate='none'); reference-only.
    return 0.5 * x * (1.0 + lax.erf(x * 0.7071067811865476))


def _round_up(n, m):
    return ((n + m - 1) // m) * m


def _im2col(x):
    """NCHW x -> [B, Ho*Wo, C*9] patches for a 3x3 / stride-2 / SAME conv.
    Channel-last output spec => the reshape is layout-only (no HBM transpose)."""
    patches = lax.conv_general_dilated_patches(
        x, filter_shape=(3, 3), window_strides=(2, 2), padding="SAME",
        dimension_numbers=("NCHW", "OIHW", "NHWC"))        # [B, Ho, Wo, C*9]
    B, Ho, Wo, K = patches.shape
    return patches.reshape(B, Ho * Wo, K), Ho, Wo


# ---------------- fused kernel: stem matmul + GELU + pool + head -------------
def fused_encoder_forward(patches, w_stem, b_stem, w_proj, b_proj, gamma, beta,
                          *, s_actual, d_actual, ts):
    """patches: [B, S_pad, Kp] bf16; w_stem: [Kp, Fp] bf16; b_stem: [1, Fp] f32;
    w_proj: [Fp, Dp] bf16; b_proj/gamma/beta: [1, Dp] f32.
    Returns [B, 1, Dp] f32 =
      GELU(LN(mean_pool_S(GELU(patches @ w_stem + b_stem)) @ w_proj + b_proj))."""
    B, s_pad, kp = patches.shape
    fp = w_stem.shape[1]
    dp = w_proj.shape[1]
    num_s = s_pad // ts
    n_pad = s_pad - s_actual
    inv_s = 1.0 / float(s_actual)
    inv_d = 1.0 / float(d_actual)

    def kernel(p_ref, w_ref, b_ref, wp_ref, bp_ref, g_ref, be_ref, o_ref, acc_ref):
        s = pl.program_id(1)

        @pl.when(s == 0)
        def _():
            acc_ref[...] = jnp.zeros_like(acc_ref)

        # -- stem: im2col matmul (bf16 MXU, f32 accumulate) + bias + GELU ----
        h = jnp.dot(p_ref[0], w_ref[...],
                    preferred_element_type=jnp.float32)           # (ts, fp) f32
        h = _gelu_tanh(h + b_ref[...])                            # VPU + EUP
        # Pure-VPU partial reduction into the (8, fp) accumulator; the single
        # 8->1 cross-sublane (XLU) reduce is deferred to the epilogue.
        acc_ref[...] += jnp.sum(h.reshape(ts // 8, 8, fp), axis=0)

        # -- epilogue on the last spatial tile: pool + proj + LN + GELU ------
        @pl.when(s == num_s - 1)
        def _():
            total = jnp.sum(acc_ref[...], axis=0, keepdims=True)  # (1, fp)
            if n_pad:
                # Zero-padded patch rows each contribute exactly GELU(bias);
                # subtract them once instead of masking every tile.
                total = total - float(n_pad) * _gelu_tanh(b_ref[...])
            pooled = total * inv_s                                 # (1, fp) f32

            # Head: proj (bf16 MXU, f32 acc) + LayerNorm + GELU.  Broadcast to
            # 8 rows so the MXU sees a full-sublane LHS tile (negligible cost).
            pooled8 = jnp.broadcast_to(pooled, (8, fp)).astype(jnp.bfloat16)
            y = jnp.dot(pooled8, wp_ref[...],
                        preferred_element_type=jnp.float32)[0:1, :] + bp_ref[...]
            if dp == d_actual:
                mu = jnp.mean(y, axis=-1, keepdims=True)
                var = jnp.mean((y - mu) ** 2, axis=-1, keepdims=True)
            else:
                col = lax.broadcasted_iota(jnp.int32, (1, dp), 1)
                valid = col < d_actual
                y = jnp.where(valid, y, 0.0)
                mu = jnp.sum(y, axis=-1, keepdims=True) * inv_d
                var = jnp.sum(jnp.where(valid, (y - mu) ** 2, 0.0),
                              axis=-1, keepdims=True) * inv_d
            yn = (y - mu) * lax.rsqrt(var + 1e-5)
            yn = yn * g_ref[...] + be_ref[...]
            o_ref[0] = _gelu_tanh(yn).astype(o_ref.dtype)

    return pl.pallas_call(
        kernel,
        out_shape=jax.ShapeDtypeStruct((B, 1, dp), jnp.float32),
        grid_spec=pltpu.PrefetchScalarGridSpec(
            num_scalar_prefetch=0,
            grid=(B, num_s),
            in_specs=[
                pl.BlockSpec((1, ts, kp), lambda bi, si: (bi, si, 0)),
                pl.BlockSpec((kp, fp), lambda bi, si: (0, 0)),
                pl.BlockSpec((1, fp), lambda bi, si: (0, 0)),
                pl.BlockSpec((fp, dp), lambda bi, si: (0, 0)),
                pl.BlockSpec((1, dp), lambda bi, si: (0, 0)),
                pl.BlockSpec((1, dp), lambda bi, si: (0, 0)),
                pl.BlockSpec((1, dp), lambda bi, si: (0, 0)),
            ],
            out_specs=pl.BlockSpec((1, 1, dp), lambda bi, si: (bi, 0, 0)),
            scratch_shapes=[pltpu.VMEM((8, fp), jnp.float32)],
        ),
        # batch axis "parallel" (v7x megacore); spatial axis is the reduction.
        compiler_params=pltpu.CompilerParams(
            dimension_semantics=("parallel", "arbitrary")),
    )(patches, w_stem, b_stem, w_proj, b_proj, gamma, beta)


# ------------------------------ full forward ---------------------------------
def effnet_simple_encoder_forward(x, params, *, ts_rows=4096):
    """x: [B, 3, H, W] f32 NCHW.  Returns [B, out_dim] f32."""
    B = x.shape[0]
    # Cast to bf16 before patch extraction: halves all wrapper-side HBM
    # traffic of the im2col / pad passes (values copy exactly into patches).
    patches, Ho, Wo = _im2col(x.astype(jnp.bfloat16))      # [B, S, K] bf16
    S = Ho * Wo
    K = patches.shape[-1]
    F = params["w_stem"].shape[1]
    D = params["w_proj"].shape[1]

    kp = _round_up(K, 32)     # tiny contraction dim; don't over-pad past 32
    fp = _round_up(F, 128)    # lane-dense feature width (use 256-mult on
                              # v6e/v7x if FEAT_DIM grows large)
    dp = _round_up(D, 128)    # lane-dense output width
    ts = min(_round_up(ts_rows, 16), _round_up(S, 16))   # bf16 sublane packing
    s_pad = _round_up(S, ts)

    # Zero-padded weight/bias feature columns keep padded lanes at exactly
    # GELU(0) == 0, so they never pollute downstream math.
    patches_p = jnp.pad(patches, ((0, 0), (0, s_pad - S), (0, kp - K)))
    w_stem_p = jnp.pad(params["w_stem"],
                       ((0, kp - K), (0, fp - F))).astype(jnp.bfloat16)
    b_stem_p = jnp.pad(params["b_stem"], ((0, 0), (0, fp - F)))
    w_proj_p = jnp.pad(params["w_proj"],
                       ((0, fp - F), (0, dp - D))).astype(jnp.bfloat16)
    b_proj_p = jnp.pad(params["b_proj"], ((0, 0), (0, dp - D)))
    gamma_p = jnp.pad(params["gamma"], ((0, 0), (0, dp - D)))
    beta_p = jnp.pad(params["beta"], ((0, 0), (0, dp - D)))

    out = fused_encoder_forward(patches_p, w_stem_p, b_stem_p, w_proj_p,
                                b_proj_p, gamma_p, beta_p,
                                s_actual=S, d_actual=D, ts=ts)
    out = out.reshape(B, dp)
    # dropout(p=0.1): inference -> identity
    return out[:, :D] if dp != D else out


# ------------------------- pure-JAX references (check) -----------------------
def reference_forward(x, params, *, match_kernel=True):
    """match_kernel=True reproduces the kernel's numerics (bf16 matmul inputs,
    tanh GELU); match_kernel=False is the full-precision, exact-erf reference."""
    gelu = _gelu_tanh if match_kernel else _gelu_exact
    xin = x.astype(jnp.bfloat16) if match_kernel else x
    patches, _, _ = _im2col(xin)                           # [B, S, K]
    w_stem = (params["w_stem"].astype(jnp.bfloat16)
              if match_kernel else params["w_stem"])
    h = gelu(jnp.dot(patches, w_stem, preferred_element_type=jnp.float32)
             + params["b_stem"])                           # [B, S, F] f32
    pooled = h.mean(axis=1)                                # [B, F]
    if match_kernel:
        y = jnp.dot(pooled.astype(jnp.bfloat16),
                    params["w_proj"].astype(jnp.bfloat16),
                    preferred_element_type=jnp.float32) + params["b_proj"]
    else:
        y = pooled @ params["w_proj"] + params["b_proj"]
    mu = y.mean(axis=-1, keepdims=True)
    var = ((y - mu) ** 2).mean(axis=-1, keepdims=True)
    yn = (y - mu) * lax.rsqrt(var + 1e-5)
    yn = yn * params["gamma"] + params["beta"]
    return gelu(yn)


if __name__ == "__main__":
    # small shapes: batch=2, in-channels=3 (RGB, as the backbone expects),
    # spatial=16, stand-in feature_dim=32, out_dim=128 (module default)
    B, C, H, W = 2, 3, 16, 16
    FEAT_DIM, OUT_DIM = 32, 128
    K = C * 3 * 3

    key = jax.random.PRNGKey(0)
    k1, k2, k3, k4, k5, k6, kx, kx2 = jax.random.split(key, 8)
    params = {
        "w_stem": jax.random.normal(k1, (K, FEAT_DIM), jnp.float32) * 0.1,
        "b_stem": jax.random.normal(k2, (1, FEAT_DIM), jnp.float32) * 0.01,
        "w_proj": jax.random.normal(k3, (FEAT_DIM, OUT_DIM), jnp.float32) * 0.1,
        "b_proj": jax.random.normal(k4, (1, OUT_DIM), jnp.float32) * 0.01,
        "gamma": jnp.ones((1, OUT_DIM), jnp.float32)
                 + 0.05 * jax.random.normal(k5, (1, OUT_DIM), jnp.float32),
        "beta": 0.05 * jax.random.normal(k6, (1, OUT_DIM), jnp.float32),
    }
    x = jax.random.normal(kx, (B, C, H, W), jnp.float32)

    fwd = jax.jit(effnet_simple_encoder_forward, static_argnames=("ts_rows",))
    out = jax.block_until_ready(fwd(x, params))

    ref_matched = reference_forward(x, params, match_kernel=True)
    ref_exact = reference_forward(x, params, match_kernel=False)

    assert out.shape == (B, OUT_DIM), out.shape
    assert jnp.allclose(out, ref_matched, rtol=2e-3, atol=2e-3), float(
        jnp.max(jnp.abs(out - ref_matched)))
    # looser bound vs the f32 exact-erf reference (bf16 matmul inputs and
    # tanh-approx GELU are intentional, documented tradeoffs)
    assert jnp.allclose(out, ref_exact, rtol=1.5e-1, atol=1.5e-1), float(
        jnp.max(jnp.abs(out - ref_exact)))

    # second run: odd spatial size + tiny tile exercises multi-tile spatial
    # accumulation and the pad-row epilogue correction path
    x2 = jax.random.normal(kx2, (B, C, 14, 14), jnp.float32)
    out2 = jax.block_until_ready(fwd(x2, params, ts_rows=16))
    ref2 = reference_forward(x2, params, match_kernel=True)
    assert jnp.allclose(out2, ref2, rtol=2e-3, atol=2e-3), float(
        jnp.max(jnp.abs(out2 - ref2)))

    print("KERNEL_OK")
</pallas_src>

<mosaic_0001>
module attributes {stable_mosaic.version = 11 : i64} {
  func.func @kernel(%arg0: i32, %arg1: i32, %arg2: memref<1x64x32xbf16, #tpu.memory_space<vmem>>, %arg3: memref<32x128xbf16, #tpu.memory_space<vmem>>, %arg4: memref<1x128xf32, #tpu.memory_space<vmem>>, %arg5: memref<128x128xbf16, #tpu.memory_space<vmem>>, %arg6: memref<1x128xf32, #tpu.memory_space<vmem>>, %arg7: memref<1x128xf32, #tpu.memory_space<vmem>>, %arg8: memref<1x128xf32, #tpu.memory_space<vmem>>, %arg9: memref<1x1x128xf32, #tpu.memory_space<vmem>>, %arg10: memref<8x128xf32, #tpu.memory_space<vmem>>) attributes {dimension_semantics = [#tpu.dimension_semantics<parallel>, #tpu.dimension_semantics<arbitrary>], iteration_bounds = array<i64: 2, 1>, scalar_prefetch = 0 : i64, scratch_operands = 1 : i64, tpu.core_type = #tpu.core_type<tc>, window_params = [{transform_indices = @transform_0, window_bounds = array<i64: 1, 64, 32>}, {pipeline_mode = #tpu.pipeline_mode<synchronous>, transform_indices = @transform_1, window_bounds = array<i64: 32, 128>}, {pipeline_mode = #tpu.pipeline_mode<synchronous>, transform_indices = @transform_2, window_bounds = array<i64: 1, 128>}, {pipeline_mode = #tpu.pipeline_mode<synchronous>, transform_indices = @transform_3, window_bounds = array<i64: 128, 128>}, {pipeline_mode = #tpu.pipeline_mode<synchronous>, transform_indices = @transform_4, window_bounds = array<i64: 1, 128>}, {pipeline_mode = #tpu.pipeline_mode<synchronous>, transform_indices = @transform_5, window_bounds = array<i64: 1, 128>}, {pipeline_mode = #tpu.pipeline_mode<synchronous>, transform_indices = @transform_6, window_bounds = array<i64: 1, 128>}, {transform_indices = @transform_7, window_bounds = array<i64: 1, 1, 128>}]} {
    %c0_i32 = arith.constant 0 : i32
    %0 = arith.cmpi eq, %arg1, %c0_i32 : i32
    %1 = arith.extui %0 : i1 to i32
    %c0_i32_0 = arith.constant 0 : i32
    %2 = arith.cmpi ne, %1, %c0_i32_0 : i32
    scf.if %2 {
      %cst_18 = arith.constant 0.000000e+00 : f32
      %31 = vector.broadcast %cst_18 : f32 to vector<8x128xf32>
      %c0_19 = arith.constant 0 : index
      %c0_20 = arith.constant 0 : index
      %32 = vector.load %arg10[%c0_19, %c0_20] : memref<8x128xf32, #tpu.memory_space<vmem>>, vector<8x128xf32>
      tpu.vector_store %arg10[%c0_19, %c0_20], %31 {strides = array<i32>} : memref<8x128xf32, #tpu.memory_space<vmem>>, vector<8x128xf32>,
    } else {
    }
    %c0 = arith.constant 0 : index
    %c0_1 = arith.constant 0 : index
    %c0_2 = arith.constant 0 : index
    %3 = vector.load %arg2[%c0, %c0_1, %c0_2] : memref<1x64x32xbf16, #tpu.memory_space<vmem>>, vector<1x64x32xbf16>
    %4 = vector.shape_cast %3 : vector<1x64x32xbf16> to vector<64x32xbf16>
    %c0_3 = arith.constant 0 : index
    %c0_4 = arith.constant 0 : index
    %5 = vector.load %arg3[%c0_3, %c0_4] : memref<32x128xbf16, #tpu.memory_space<vmem>>, vector<32x128xbf16>
    %cst = arith.constant dense<0.000000e+00> : vector<64x128xf32>
    %6 = tpu.matmul %4, %5, %cst {dimension_numbers = #tpu.dot_dimension_numbers<[1], [0], [0], [1], [0, 0, 1, 1], [], []>} : vector<64x32xbf16>, vector<32x128xbf16>, vector<64x128xf32> -> vector<64x128xf32>
    %c0_5 = arith.constant 0 : index
    %c0_6 = arith.constant 0 : index
    %7 = vector.load %arg4[%c0_5, %c0_6] : memref<1x128xf32, #tpu.memory_space<vmem>>, vector<1x128xf32>
    %8 = vector.broadcast %7 : vector<1x128xf32> to vector<64x128xf32>
    %9 = arith.addf %6, %8 : vector<64x128xf32>
    %cst_7 = arith.constant 5.000000e-01 : f32
    %10 = vector.broadcast %cst_7 : f32 to vector<64x128xf32>
    %11 = arith.mulf %10, %9 : vector<64x128xf32>
    %cst_8 = arith.constant 4.471500e-02 : f32
    %12 = vector.broadcast %cst_8 : f32 to vector<64x128xf32>
    %13 = arith.mulf %12, %9 : vector<64x128xf32>
    %14 = arith.mulf %13, %9 : vector<64x128xf32>
    %15 = arith.mulf %14, %9 : vector<64x128xf32>
    %16 = arith.addf %9, %15 : vector<64x128xf32>
    %cst_9 = arith.constant 0.797884583 : f32
    %17 = vector.broadcast %cst_9 : f32 to vector<64x128xf32>
    %18 = arith.mulf %17, %16 : vector<64x128xf32>
    %19 = math.tanh %18 : vector<64x128xf32>
    %cst_10 = arith.constant 1.000000e+00 : f32
    %20 = vector.broadcast %cst_10 : f32 to vector<64x128xf32>
    %21 = arith.addf %20, %19 : vector<64x128xf32>
    %22 = arith.mulf %11, %21 : vector<64x128xf32>
    %c0_11 = arith.constant 0 : index
    %c0_12 = arith.constant 0 : index
    %23 = vector.load %arg10[%c0_11, %c0_12] : memref<8x128xf32, #tpu.memory_space<vmem>>, vector<8x128xf32>
    %24 = vector.shape_cast %22 : vector<64x128xf32> to vector<8x8x128xf32>
    %cst_13 = arith.constant dense<0.000000e+00> : vector<8x128xf32>
    %25 = vector.multi_reduction <add>, %24, %cst_13 [0] : vector<8x8x128xf32> to vector<8x128xf32>
    %26 = arith.addf %23, %25 : vector<8x128xf32>
    %c0_14 = arith.constant 0 : index
    %c0_15 = arith.constant 0 : index
    %27 = vector.load %arg10[%c0_14, %c0_15] : memref<8x128xf32, #tpu.memory_space<vmem>>, vector<8x128xf32>
    tpu.vector_store %arg10[%c0_14, %c0_15], %26 {strides = array<i32>} : memref<8x128xf32, #tpu.memory_space<vmem>>, vector<8x128xf32>,
    %c0_i32_16 = arith.constant 0 : i32
    %28 = arith.cmpi eq, %arg1, %c0_i32_16 : i32
    %29 = arith.extui %28 : i1 to i32
    %c0_i32_17 = arith.constant 0 : i32
    %30 = arith.cmpi ne, %29, %c0_i32_17 : i32
    scf.if %30 {
      %c0_18 = arith.constant 0 : index
      %c0_19 = arith.constant 0 : index
      %31 = vector.load %arg10[%c0_18, %c0_19] : memref<8x128xf32, #tpu.memory_space<vmem>>, vector<8x128xf32>
      %cst_20 = arith.constant dense<0.000000e+00> : vector<128xf32>
      %32 = vector.multi_reduction <add>, %31, %cst_20 [0] : vector<8x128xf32> to vector<128xf32>
      %33 = vector.shape_cast %32 : vector<128xf32> to vector<1x128xf32>
      %cst_21 = arith.constant 1.562500e-02 : f32
      %34 = vector.broadcast %cst_21 : f32 to vector<1x128xf32>
      %35 = arith.mulf %33, %34 : vector<1x128xf32>
      %36 = vector.shape_cast %35 : vector<1x128xf32> to vector<1x128xf32>
      %37 = vector.broadcast %36 : vector<1x128xf32> to vector<8x128xf32>
      %38 = arith.truncf %37 : vector<8x128xf32> to vector<8x128xbf16>
      %c0_22 = arith.constant 0 : index
      %c0_23 = arith.constant 0 : index
      %39 = vector.load %arg5[%c0_22, %c0_23] : memref<128x128xbf16, #tpu.memory_space<vmem>>, vector<128x128xbf16>
      %cst_24 = arith.constant dense<0.000000e+00> : vector<8x128xf32>
      %40 = tpu.matmul %38, %39, %cst_24 {dimension_numbers = #tpu.dot_dimension_numbers<[1], [0], [0], [1], [0, 0, 1, 1], [], []>} : vector<8x128xbf16>, vector<128x128xbf16>, vector<8x128xf32> -> vector<8x128xf32>
      %41 = vector.extract_strided_slice %40 {offsets = [0, 0], sizes = [1, 128], strides = [1, 1]} : vector<8x128xf32> to vector<1x128xf32>
      %c0_25 = arith.constant 0 : index
      %c0_26 = arith.constant 0 : index
      %42 = vector.load %arg6[%c0_25, %c0_26] : memref<1x128xf32, #tpu.memory_space<vmem>>, vector<1x128xf32>
      %43 = arith.addf %41, %42 : vector<1x128xf32>
      %cst_27 = arith.constant dense<0.000000e+00> : vector<1xf32>
      %44 = vector.multi_reduction <add>, %43, %cst_27 [1] : vector<1x128xf32> to vector<1xf32>
      %45 = vector.shape_cast %44 : vector<1xf32> to vector<1x1xf32>
      %cst_28 = arith.constant 1.280000e+02 : f32
      %46 = vector.broadcast %cst_28 : f32 to vector<1x1xf32>
      %47 = arith.divf %45, %46 : vector<1x1xf32>
      %48 = vector.broadcast %47 : vector<1x1xf32> to vector<1x128xf32>
      %49 = arith.subf %43, %48 : vector<1x128xf32>
      %50 = arith.mulf %49, %49 : vector<1x128xf32>
      %cst_29 = arith.constant dense<0.000000e+00> : vector<1xf32>
      %51 = vector.multi_reduction <add>, %50, %cst_29 [1] : vector<1x128xf32> to vector<1xf32>
      %52 = vector.shape_cast %51 : vector<1xf32> to vector<1x1xf32>
      %cst_30 = arith.constant 1.280000e+02 : f32
      %53 = vector.broadcast %cst_30 : f32 to vector<1x1xf32>
      %54 = arith.divf %52, %53 : vector<1x1xf32>
      %55 = vector.broadcast %47 : vector<1x1xf32> to vector<1x128xf32>
      %56 = arith.subf %43, %55 : vector<1x128xf32>
      %cst_31 = arith.constant 9.99999974E-6 : f32
      %57 = vector.broadcast %cst_31 : f32 to vector<1x1xf32>
      %58 = arith.addf %54, %57 : vector<1x1xf32>
      %59 = math.rsqrt %58 : vector<1x1xf32>
      %60 = vector.broadcast %59 : vector<1x1xf32> to vector<1x128xf32>
      %61 = arith.mulf %56, %60 : vector<1x128xf32>
      %c0_32 = arith.constant 0 : index
      %c0_33 = arith.constant 0 : index
      %62 = vector.load %arg7[%c0_32, %c0_33] : memref<1x128xf32, #tpu.memory_space<vmem>>, vector<1x128xf32>
      %63 = arith.mulf %61, %62 : vector<1x128xf32>
      %c0_34 = arith.constant 0 : index
      %c0_35 = arith.constant 0 : index
      %64 = vector.load %arg8[%c0_34, %c0_35] : memref<1x128xf32, #tpu.memory_space<vmem>>, vector<1x128xf32>
      %65 = arith.addf %63, %64 : vector<1x128xf32>
      %cst_36 = arith.constant 5.000000e-01 : f32
      %66 = vector.broadcast %cst_36 : f32 to vector<1x128xf32>
      %67 = arith.mulf %66, %65 : vector<1x128xf32>
      %cst_37 = arith.constant 4.471500e-02 : f32
      %68 = vector.broadcast %cst_37 : f32 to vector<1x128xf32>
      %69 = arith.mulf %68, %65 : vector<1x128xf32>
      %70 = arith.mulf %69, %65 : vector<1x128xf32>
      %71 = arith.mulf %70, %65 : vector<1x128xf32>
      %72 = arith.addf %65, %71 : vector<1x128xf32>
      %cst_38 = arith.constant 0.797884583 : f32
      %73 = vector.broadcast %cst_38 : f32 to vector<1x128xf32>
      %74 = arith.mulf %73, %72 : vector<1x128xf32>
      %75 = math.tanh %74 : vector<1x128xf32>
      %cst_39 = arith.constant 1.000000e+00 : f32
      %76 = vector.broadcast %cst_39 : f32 to vector<1x128xf32>
      %77 = arith.addf %76, %75 : vector<1x128xf32>
      %78 = arith.mulf %67, %77 : vector<1x128xf32>
      %c0_40 = arith.constant 0 : index
      %c0_41 = arith.constant 0 : index
      %c0_42 = arith.constant 0 : index
      %79 = vector.load %arg9[%c0_40, %c0_41, %c0_42] : memref<1x1x128xf32, #tpu.memory_space<vmem>>, vector<1x1x128xf32>
      %80 = vector.shape_cast %79 : vector<1x1x128xf32> to vector<1x128xf32>
      %81 = vector.shape_cast %78 : vector<1x128xf32> to vector<1x1x128xf32>
      tpu.vector_store %arg9[%c0_40, %c0_41, %c0_42], %81 {strides = array<i32>} : memref<1x1x128xf32, #tpu.memory_space<vmem>>, vector<1x1x128xf32>,
    } else {
    }
    return
  }
  func.func @transform_0(%arg0: i32, %arg1: i32) -> (i32, i32, i32) {
    %c0_i32 = arith.constant 0 : i32
    %c0_i32_0 = arith.constant 0 : i32
    return %arg0, %arg1, %c0_i32 : i32, i32, i32
  }
  func.func @transform_1(%arg0: i32, %arg1: i32) -> (i32, i32) {
    %c0_i32 = arith.constant 0 : i32
    %c0_i32_0 = arith.constant 0 : i32
    %c0_i32_1 = arith.constant 0 : i32
    return %c0_i32, %c0_i32_0 : i32, i32
  }
  func.func @transform_2(%arg0: i32, %arg1: i32) -> (i32, i32) {
    %c0_i32 = arith.constant 0 : i32
    %c0_i32_0 = arith.constant 0 : i32
    %c0_i32_1 = arith.constant 0 : i32
    return %c0_i32, %c0_i32_0 : i32, i32
  }
  func.func @transform_3(%arg0: i32, %arg1: i32) -> (i32, i32) {
    %c0_i32 = arith.constant 0 : i32
    %c0_i32_0 = arith.constant 0 : i32
    %c0_i32_1 = arith.constant 0 : i32
    return %c0_i32, %c0_i32_0 : i32, i32
  }
  func.func @transform_4(%arg0: i32, %arg1: i32) -> (i32, i32) {
    %c0_i32 = arith.constant 0 : i32
    %c0_i32_0 = arith.constant 0 : i32
    %c0_i32_1 = arith.constant 0 : i32
    return %c0_i32, %c0_i32_0 : i32, i32
  }
  func.func @transform_5(%arg0: i32, %arg1: i32) -> (i32, i32) {
    %c0_i32 = arith.constant 0 : i32
    %c0_i32_0 = arith.constant 0 : i32
    %c0_i32_1 = arith.constant 0 : i32
    return %c0_i32, %c0_i32_0 : i32, i32
  }
  func.func @transform_6(%arg0: i32, %arg1: i32) -> (i32, i32) {
    %c0_i32 = arith.constant 0 : i32
    %c0_i32_0 = arith.constant 0 : i32
    %c0_i32_1 = arith.constant 0 : i32
    return %c0_i32, %c0_i32_0 : i32, i32
  }
  func.func @transform_7(%arg0: i32, %arg1: i32) -> (i32, i32, i32) {
    %c0_i32 = arith.constant 0 : i32
    %c0_i32_0 = arith.constant 0 : i32
    %c0_i32_1 = arith.constant 0 : i32
    return %arg0, %c0_i32, %c0_i32_0 : i32, i32, i32
  }
}

</mosaic_0001>

<llo_original>
// kernel: effnet_simple_encoder_forward.1
$region0: #{effnet_simple_encoder_forward.1}
  #allocation0 [shape = 'u32[]', space=smem, size = 0x4, offset = 0x4, fixed_abs, tag = 'smem constant byte address 0x4 - core index']
  #allocation1 [shape = 'u32[144,128]{1,0:T(1,128)}', space=vmem, size = 0x12000, scoped, tag = 'internal scratch']
  #allocation2 [shape = 'f32[8,128]{1,0:T(8,128)}', space=vmem, size = 0x1000, scoped, tag = 'scratch operand']
  %s0 = inlined_call_operand.vmem [shape: bf16[2,64,32], index: 0, kind: input, shape index: {}]
  %s1 = inlined_call_operand.vmem [shape: bf16[32,128], index: 1, kind: input, shape index: {}]
  %s2 = inlined_call_operand.vmem [shape: f32[1,128], index: 2, kind: input, shape index: {}]
  %s3 = inlined_call_operand.vmem [shape: bf16[128,128], index: 3, kind: input, shape index: {}]
  %s4 = inlined_call_operand.vmem [shape: f32[1,128], index: 4, kind: input, shape index: {}]
  %s5 = inlined_call_operand.vmem [shape: f32[1,128], index: 5, kind: input, shape index: {}]
  %s6 = inlined_call_operand.vmem [shape: f32[1,128], index: 6, kind: input, shape index: {}]
  %s7 = inlined_call_operand.hbm [shape: f32[2,1,128], index: 7, kind: output, shape index: {}]
  %s8 = sld [smem:[#allocation0]]
  $region69: #{effnet_simple_encoder_forward.1} parent=0
    _
  %s10 = ssub.s32 1, %s8
  %s11 = scalar_select 0, %s10, %s8
  $region1: #{effnet_simple_encoder_forward.1} parent=0
    #allocation3 [shape = 'u8[1024]{0}', space=vmem, size = 0x400, scoped, tag = 'output window, operand 0']
    #allocation4 [shape = 's32[2]{0}', space=sflag, size = 0x8, scoped, tag = 'scoped memory for effnet_simple_encoder_forward.1']
    %12 = vsyncpa [#allocation4], 0
    %s13 = scalar_lea.sflag [#allocation4], 1
    %14 = vsyncpa %s13, 0
    loop: start=0, step=1, limit=4
    $region2: #{effnet_simple_encoder_forward.1} parent=1 // loop_pre_header
      _
    $region3: #{effnet_simple_encoder_forward.1} parent=1 // loop_header
      %s16 = sphi 0, %s20
      %p17 = scmp.ge.s32.totalorder %s16, 4
      %s23 = sphi 0, %s35
      %s24 = sphi 0, %s31
      %s25 = sphi 0, %s23
      %s26 = sphi 0, %s24
      %s27 = sphi 0, %s25
      %s28 = sphi 0, %s26
      %s40 = sphi 0, %s42
      %s43 = sphi 0, %s40
      %s44 = sphi 0, %s43
      %s60 = sphi 0, %s44
      %s64 = sphi 0, %s64
      %s66 = sphi 0, %s64
      %s67 = sphi 0, %s66
      %s81 = sphi 0, %s67
      %s85 = sphi 0, %s85
      %s87 = sphi 0, %s85
      %s88 = sphi 0, %s87
      %s102 = sphi 0, %s88
      %s106 = sphi 0, %s106
      %s108 = sphi 0, %s106
      %s109 = sphi 0, %s108
      %s123 = sphi 0, %s109
      %s127 = sphi 0, %s127
      %s129 = sphi 0, %s127
      %s130 = sphi 0, %s129
      %s144 = sphi 0, %s130
      %s148 = sphi 0, %s148
      %s150 = sphi 0, %s148
      %s151 = sphi 0, %s150
      %s165 = sphi 0, %s151
      %s169 = sphi 0, %s169
      %s171 = sphi 0, %s169
      %s172 = sphi 0, %s171
      %s186 = sphi 0, %s172
      %s192 = sphi 0, %s194
      %s195 = sphi 0, %s192
      %s196 = sphi 0, %s195
      %s212 = sphi 0, %s196
    $region4: #{effnet_simple_encoder_forward.1} parent=1 // loop_header_branch
      %19 = sbr.rel (%p17) target = $region8
    $region5: #{effnet_simple_encoder_forward.1} parent=1 // loop_body
      %s21 = ssub.s32 %s16, 1
      %s22 = ssub.s32 %s16, 2
      %s29 = sadd.s32 1, %s24
      %p30 = scmp.ge.s32.totalorder %s29, 1
      %s31 = scalar_select %p30, 0, %s29
      %s32 = sadd.s32 1, %s23
      %s33 = scalar_select %p30, %s32, %s23
      %p34 = scmp.ge.s32.totalorder %s33, 2
      %s35 = scalar_select %p34, 0, %s33
      %s36 = ssub.s32 %s23, %s35
      %s37 = ssub.s32 %s24, %s31
      %s38 = sor.u32 %s36, %s37
      %p39 = scmp.eq.s32.totalorder %s38, 0
      %s41 = sadd.s32 %s40, 1
      %s42 = scalar_select %p39, %s40, %s41
      %p45 = pneg %p39
      %p46 = scmp.eq.s32.totalorder %s16, 1
      %p47 = por %p45, %p46
      %p48 = scmp.ne.s32.totalorder %s40, %s43
      %p49 = scmp.eq.s32.totalorder %s16, 0
      %p50 = por %p48, %p49
      %p51 = scmp.ne.s32.totalorder %s40, %s43
      %p52 = scmp.eq.s32.totalorder %s21, 1
      %p53 = por %p51, %p52
      %p54 = scmp.ne.s32.totalorder %s43, %s44
      %p55 = scmp.eq.s32.totalorder %s21, 0
      %p56 = por %p54, %p55
      %p57 = scmp.ne.s32.totalorder %s43, %s44
      %p58 = scmp.eq.s32.totalorder %s22, 1
      %p59 = por %p57, %p58
      %p61 = scmp.ne.s32.totalorder %s44, %s60
      %p62 = scmp.eq.s32.totalorder %s22, 0
      %p63 = por %p61, %p62
      %s65 = sadd.s32 %s64, 1
      %p68 = scmp.eq.s32.totalorder %s16, 1
      %p69 = scmp.ne.s32.totalorder %s64, %s66
      %p70 = scmp.eq.s32.totalorder %s16, 0
      %p71 = por %p69, %p70
      %p72 = scmp.ne.s32.totalorder %s64, %s66
      %p73 = scmp.eq.s32.totalorder %s21, 1
      %p74 = por %p72, %p73
      %p75 = scmp.ne.s32.totalorder %s66, %s67
      %p76 = scmp.eq.s32.totalorder %s21, 0
      %p77 = por %p75, %p76
      %p78 = scmp.ne.s32.totalorder %s66, %s67
      %p79 = scmp.eq.s32.totalorder %s22, 1
      %p80 = por %p78, %p79
      %p82 = scmp.ne.s32.totalorder %s67, %s81
      %p83 = scmp.eq.s32.totalorder %s22, 0
      %p84 = por %p82, %p83
      %s86 = sadd.s32 %s85, 1
      %p89 = scmp.eq.s32.totalorder %s16, 1
      %p90 = scmp.ne.s32.totalorder %s85, %s87
      %p91 = scmp.eq.s32.totalorder %s16, 0
      %p92 = por %p90, %p91
      %p93 = scmp.ne.s32.totalorder %s85, %s87
      %p94 = scmp.eq.s32.totalorder %s21, 1
      %p95 = por %p93, %p94
      %p96 = scmp.ne.s32.totalorder %s87, %s88
      %p97 = scmp.eq.s32.totalorder %s21, 0
      %p98 = por %p96, %p97
      %p99 = scmp.ne.s32.totalorder %s87, %s88
      %p100 = scmp.eq.s32.totalorder %s22, 1
      %p101 = por %p99, %p100
      %p103 = scmp.ne.s32.totalorder %s88, %s102
      %p104 = scmp.eq.s32.totalorder %s22, 0
      %p105 = por %p103, %p104
      %s107 = sadd.s32 %s106, 1
      %p110 = scmp.eq.s32.totalorder %s16, 1
      %p111 = scmp.ne.s32.totalorder %s106, %s108
      %p112 = scmp.eq.s32.totalorder %s16, 0
      %p113 = por %p111, %p112
      %p114 = scmp.ne.s32.totalorder %s106, %s108
      %p115 = scmp.eq.s32.totalorder %s21, 1
      %p116 = por %p114, %p115
      %p117 = scmp.ne.s32.totalorder %s108, %s109
      %p118 = scmp.eq.s32.totalorder %s21, 0
      %p119 = por %p117, %p118
      %p120 = scmp.ne.s32.totalorder %s108, %s109
      %p121 = scmp.eq.s32.totalorder %s22, 1
      %p122 = por %p120, %p121
      %p124 = scmp.ne.s32.totalorder %s109, %s123
      %p125 = scmp.eq.s32.totalorder %s22, 0
      %p126 = por %p124, %p125
      %s128 = sadd.s32 %s127, 1
      %p131 = scmp.eq.s32.totalorder %s16, 1
      %p132 = scmp.ne.s32.totalorder %s127, %s129
      %p133 = scmp.eq.s32.totalorder %s16, 0
      %p134 = por %p132, %p133
      %p135 = scmp.ne.s32.totalorder %s127, %s129
      %p136 = scmp.eq.s32.totalorder %s21, 1
      %p137 = por %p135, %p136
      %p138 = scmp.ne.s32.totalorder %s129, %s130
      %p139 = scmp.eq.s32.totalorder %s21, 0
      %p140 = por %p138, %p139
      %p141 = scmp.ne.s32.totalorder %s129, %s130
      %p142 = scmp.eq.s32.totalorder %s22, 1
      %p143 = por %p141, %p142
      %p145 = scmp.ne.s32.totalorder %s130, %s144
      %p146 = scmp.eq.s32.totalorder %s22, 0
      %p147 = por %p145, %p146
      %s149 = sadd.s32 %s148, 1
      %p152 = scmp.eq.s32.totalorder %s16, 1
      %p153 = scmp.ne.s32.totalorder %s148, %s150
      %p154 = scmp.eq.s32.totalorder %s16, 0
      %p155 = por %p153, %p154
      %p156 = scmp.ne.s32.totalorder %s148, %s150
      %p157 = scmp.eq.s32.totalorder %s21, 1
      %p158 = por %p156, %p157
      %p159 = scmp.ne.s32.totalorder %s150, %s151
      %p160 = scmp.eq.s32.totalorder %s21, 0
      %p161 = por %p159, %p160
      %p162 = scmp.ne.s32.totalorder %s150, %s151
      %p163 = scmp.eq.s32.totalorder %s22, 1
      %p164 = por %p162, %p163
      %p166 = scmp.ne.s32.totalorder %s151, %s165
      %p167 = scmp.eq.s32.totalorder %s22, 0
      %p168 = por %p166, %p167
      %s170 = sadd.s32 %s169, 1
      %p173 = scmp.eq.s32.totalorder %s16, 1
      %p174 = scmp.ne.s32.totalorder %s169, %s171
      %p175 = scmp.eq.s32.totalorder %s16, 0
      %p176 = por %p174, %p175
      %p177 = scmp.ne.s32.totalorder %s169, %s171
      %p178 = scmp.eq.s32.totalorder %s21, 1
      %p179 = por %p177, %p178
      %p180 = scmp.ne.s32.totalorder %s171, %s172
      %p181 = scmp.eq.s32.totalorder %s21, 0
      %p182 = por %p180, %p181
      %p183 = scmp.ne.s32.totalorder %s171, %s172
      %p184 = scmp.eq.s32.totalorder %s22, 1
      %p185 = por %p183, %p184
      %p187 = scmp.ne.s32.totalorder %s172, %s186
      %p188 = scmp.eq.s32.totalorder %s22, 0
      %p189 = por %p187, %p188
      %s190 = ssub.s32 %s23, %s35
      %p191 = scmp.eq.s32.totalorder %s190, 0
      %s193 = sadd.s32 %s192, 1
      %s194 = scalar_select %p191, %s192, %s193
      %p197 = pneg %p191
      %p198 = scmp.eq.s32.totalorder %s16, 1
      %p199 = por %p197, %p198
      %p200 = scmp.ne.s32.totalorder %s192, %s195
      %p201 = scmp.eq.s32.totalorder %s16, 0
      %p202 = por %p200, %p201
      %p203 = scmp.ne.s32.totalorder %s192, %s195
      %p204 = scmp.eq.s32.totalorder %s21, 1
      %p205 = por %p203, %p204
      %p206 = scmp.ne.s32.totalorder %s195, %s196
      %p207 = scmp.eq.s32.totalorder %s21, 0
      %p208 = por %p206, %p207
      %p209 = scmp.ne.s32.totalorder %s195, %s196
      %p210 = scmp.eq.s32.totalorder %s22, 1
      %p211 = por %p209, %p210
      %p213 = scmp.ne.s32.totalorder %s196, %s212
      %p214 = scmp.eq.s32.totalorder %s22, 0
      %p215 = por %p213, %p214
      %p216 = scmp.le.s32.totalorder 1, %s16
      %p217 = scmp.lt.s32.totalorder %s16, 3
      %p218 = pnand %p216, %p217
      %p219 = pneg %p218
      // Predicated region
      $region9: #{effnet_simple_encoder_forward.1} parent=5 // pred_check
        _
      $region10: #{effnet_simple_encoder_forward.1} parent=5 // pred_check_branch
        %221 = sbr.rel (%p218) target = $region12
      $region11: #{effnet_simple_encoder_forward.1} parent=5 // pred_region
        %s222 = ssub.s32 %s16, 1
        // Predicated region
        $region13: #{effnet_simple_encoder_forward.1} parent=11 // pred_check
          %p223 = pneg %p77
        $region14: #{effnet_simple_encoder_forward.1} parent=11 // pred_check_branch
          %225 = sbr.rel (%p223) target = $region16
        $region15: #{effnet_simple_encoder_forward.1} parent=11 // pred_region
          _
        $region16: #{effnet_simple_encoder_forward.1} parent=11 // pred_fallthru
          _
        // Predicated region
        $region17: #{effnet_simple_encoder_forward.1} parent=11 // pred_check
          %p226 = pneg %p98
        $region18: #{effnet_simple_encoder_forward.1} parent=11 // pred_check_branch
          %228 = sbr.rel (%p226) target = $region20
        $region19: #{effnet_simple_encoder_forward.1} parent=11 // pred_region
          _
        $region20: #{effnet_simple_encoder_forward.1} parent=11 // pred_fallthru
          _
        // Predicated region
        $region21: #{effnet_simple_encoder_forward.1} parent=11 // pred_check
          %p229 = pneg %p119
        $region22: #{effnet_simple_encoder_forward.1} parent=11 // pred_check_branch
          %231 = sbr.rel (%p229) target = $region24
        $region23: #{effnet_simple_encoder_forward.1} parent=11 // pred_region
          _
        $region24: #{effnet_simple_encoder_forward.1} parent=11 // pred_fallthru
          _
        // Predicated region
        $region25: #{effnet_simple_encoder_forward.1} parent=11 // pred_check
          %p232 = pneg %p140
        $region26: #{effnet_simple_encoder_forward.1} parent=11 // pred_check_branch
          %234 = sbr.rel (%p232) target = $region28
        $region27: #{effnet_simple_encoder_forward.1} parent=11 // pred_region
          _
        $region28: #{effnet_simple_encoder_forward.1} parent=11 // pred_fallthru
          _
        // Predicated region
        $region29: #{effnet_simple_encoder_forward.1} parent=11 // pred_check
          %p235 = pneg %p161
        $region30: #{effnet_simple_encoder_forward.1} parent=11 // pred_check_branch
          %237 = sbr.rel (%p235) target = $region32
        $region31: #{effnet_simple_encoder_forward.1} parent=11 // pred_region
          _
        $region32: #{effnet_simple_encoder_forward.1} parent=11 // pred_fallthru
          _
        // Predicated region
        $region33: #{effnet_simple_encoder_forward.1} parent=11 // pred_check
          %p238 = pneg %p182
        $region34: #{effnet_simple_encoder_forward.1} parent=11 // pred_check_branch
          %240 = sbr.rel (%p238) target = $region36
        $region35: #{effnet_simple_encoder_forward.1} parent=11 // pred_region
          _
        $region36: #{effnet_simple_encoder_forward.1} parent=11 // pred_fallthru
          _
      $region12: #{effnet_simple_encoder_forward.1} parent=5 // pred_fallthru
        _
      %p241 = scmp.lt.s32.totalorder %s16, 2
      // Predicated region
      $region37: #{effnet_simple_encoder_forward.1} parent=5 // pred_check
        %p242 = pneg %p241
      $region38: #{effnet_simple_encoder_forward.1} parent=5 // pred_check_branch
        %244 = sbr.rel (%p242) target = $region40
      $region39: #{effnet_simple_encoder_forward.1} parent=5 // pred_region
        // Predicated region
        $region41: #{effnet_simple_encoder_forward.1} parent=39 // pred_check
          %p245 = pneg %p50
        $region42: #{effnet_simple_encoder_forward.1} parent=39 // pred_check_branch
          %247 = sbr.rel (%p245) target = $region44
        $region43: #{effnet_simple_encoder_forward.1} parent=39 // pred_region
          %s248 = smul.u32 8, %s24
          %p249 = scmp.lt.s32.totalorder %s23, 1
          %s250 = scalar_select %p249, %s23, 1
          %p251 = scmp.lt.s32.totalorder %s248, 7
          %s252 = scalar_select %p251, %s248, 7
          %s253 = smul.addr %s250, 8
          %s254 = sadd.s32 %s252, %s253
          %s255 = smul.addr %s254, 4
          %s256 = scalar_lea.vmem %s0, %s255
          %s257 = smul.u32 8, %s24
        $region44: #{effnet_simple_encoder_forward.1} parent=39 // pred_fallthru
          _
      $region40: #{effnet_simple_encoder_forward.1} parent=5 // pred_fallthru
        _
      %p258 = scmp.le.s32.totalorder 1, %s16
      %p259 = scmp.lt.s32.totalorder %s16, 3
      %p260 = pnand %p258, %p259
      %p261 = pneg %p260
      // Predicated region
      $region45: #{effnet_simple_encoder_forward.1} parent=5 // pred_check
        _
      $region46: #{effnet_simple_encoder_forward.1} parent=5 // pred_check_branch
        %263 = sbr.rel (%p260) target = $region48
      $region47: #{effnet_simple_encoder_forward.1} parent=5 // pred_region
        %s264 = ssub.s32 %s16, 1
        %s265 = smul.u32 8, %s26
        %p266 = scmp.lt.s32.totalorder %s25, 1
        %s267 = scalar_select %p266, %s25, 1
        %p268 = scmp.lt.s32.totalorder %s265, 7
        %s269 = scalar_select %p268, %s265, 7
        %s270 = smul.addr %s267, 8
        %s271 = sadd.s32 %s269, %s270
        %s272 = smul.addr %s271, 4
        %s273 = scalar_lea.vmem %s0, %s272
        %p274 = pneg %p56
        %p275 = pneg %p53
        %p276 = pneg %p77
        %p277 = pneg %p74
        %p278 = pneg %p98
        %p279 = pneg %p95
        %p280 = pneg %p119
        %p281 = pneg %p116
        %p282 = pneg %p140
        %p283 = pneg %p137
        %p284 = pneg %p161
        %p285 = pneg %p158
        %p286 = pneg %p182
        %p287 = pneg %p179
        %p288 = pneg %p208
        %p289 = pneg %p205
        %s290 = sand.u32 %s195, 1
        %s291 = scalar_lea.sflag [#allocation4], %s290
        %s292 = sand.u32 %s195, 1
        %s293 = scalar_lea.vmem [#allocation3], %s292
        %s294 = smul.u32 8, %s26
        %p295 = scmp.lt.s32.totalorder %s25, 1
        %s296 = scalar_select %p295, %s25, 1
        %p297 = scmp.lt.s32.totalorder %s294, 7
        %s298 = scalar_select %p297, %s294, 7
        %s299 = smul.addr %s296, 8
        %s300 = sadd.s32 %s298, %s299
        %s301 = smul.addr %s300, 4
        %s302 = scalar_lea.vmem %s0, %s301
        %s303 = smul.u32 8, %s26
        %p305 = scmp.eq.s32.totalorder %s26, 0
        // Predicated region
        $region49: #{effnet_simple_encoder_forward.1} parent=47 // pred_check
          %p306 = pneg %p305
        $region50: #{effnet_simple_encoder_forward.1} parent=47 // pred_check_branch
          %308 = sbr.rel (%p306) target = $region52
        $region51: #{effnet_simple_encoder_forward.1} parent=47 // pred_region
          %309 = vst [vmem:[#allocation2] sm:$0xff] 0.0
        $region52: #{effnet_simple_encoder_forward.1} parent=47 // pred_fallthru
          _
        %v310 = vld [vmem:[%s302] sm:$0xf]
        %v311 = vld [vmem:[%s302 + $0x4] sm:$0xf]
        %v312 = vld [vmem:[%s302 + $0x8] sm:$0xf]
        %v313 = vld [vmem:[%s302 + $0xc] sm:$0xf]
        %v314 = vld [vmem:[%s302 + $0x10] sm:$0xf]
        %v315 = vld [vmem:[%s302 + $0x14] sm:$0xf]
        %v316 = vld [vmem:[%s302 + $0x18] sm:$0xf]
        %v317 = vld [vmem:[%s302 + $0x1c] sm:$0xf]
        %v318 = vld [vmem:[%s1] sm:$0xf]
        %v319 = vld [vmem:[%s1 + $0x4] sm:$0xf]
        %v320 = vld [vmem:[%s1 + $0x8] sm:$0xf]
        %v321 = vld [vmem:[%s1 + $0xc] sm:$0xf]
        %v322 = vld [vmem:[%s2] sm:$0x1]
        %v324 = vlaneseq
        %v325 = vshrl.u32 %v324, 7
        %v326 = vsub.s32 0, %v325
        %v327 = vrot.slane %v322, %v326
        %v337 = vunpack.c.l.b16 %v310
        %v338 = vunpack.c.l.b16 %v311
        %v339 = vunpack.c.l.b16 %v312
        %v340 = vunpack.c.l.b16 %v313
        %v341 = vunpack.c.l.b16 %v314
        %v342 = vunpack.c.l.b16 %v315
        %v343 = vunpack.c.l.b16 %v316
        %v344 = vunpack.c.l.b16 %v317
        %v345 = vpack.c.b16 %v338, %v337
        %v346 = vpack.c.b16 %v340, %v339
        %v347 = vpack.c.b16 %v342, %v341
        %v348 = vpack.c.b16 %v344, %v343
        %v353 = vunpack.c.l.b16 %v318
        %v354 = vunpack.c.l.b16 %v319
        %v355 = vunpack.c.l.b16 %v320
        %v356 = vunpack.c.l.b16 %v321
        %v357 = vpack.c.b16 %v354, %v353
        %v358 = vpack.c.b16 %v356, %v355
        %vm361 = vcmask 261120
        %v363 = vsel %vm361, %v345, 0
        %v366 = vsel %vm361, %v346, 0
        %v369 = vsel %vm361, %v347, 0
        %v372 = vsel %vm361, %v348, 0
        %374 = vmatprep.subr.bf16.mxu0 0
        %375 = vmatpush1.bf16.msra.mxu0 0
        %376 = vmatprep.subr.bf16.mxu0 0
        %377 = vmatpush1.bf16.msra.mxu0 0
        %378 = vmatprep.subr.bf16.mxu0 0
        %379 = vmatpush1.bf16.msra.mxu0 0
        %380 = vmatprep.subr.bf16.mxu0 0
        %381 = vmatpush1.bf16.msra.mxu0 0
        %382 = vmatprep.subr.bf16.mxu0 0
        %383 = vmatpush1.bf16.msra.mxu0 0
        %384 = vmatprep.subr.bf16.mxu0 0
        %385 = vmatpush1.bf16.msra.mxu0 0
        %386 = vmatprep.subr.bf16.mxu0 0
        %387 = vmatpush1.bf16.msra.mxu0 %v358
        %388 = vmatprep.subr.bf16.mxu0 0
        %389 = vmatpush1.bf16.msra.mxu0 %v357
        %390 = vmatprep.subr.bf16.mxu0 0
        %391 = vmatpush2.bf16.msra.mxu0 0
        %392 = vmatprep.subr.bf16.mxu0 0
        %393 = vmatpush2.bf16.msra.mxu0 0
        %394 = vmatprep.subr.bf16.mxu0 0
        %395 = vmatpush2.bf16.msra.mxu0 0
        %396 = vmatprep.subr.bf16.mxu0 0
        %397 = vmatpush2.bf16.msra.mxu0 0
        %398 = vmatprep.subr.bf16.mxu0 0
        %399 = vmatpush2.bf16.msra.mxu0 0
        %400 = vmatprep.subr.bf16.mxu0 0
        %401 = vmatpush2.bf16.msra.mxu0 0
        %402 = vmatprep.subr.bf16.mxu0 0
        %403 = vmatpush2.bf16.msra.mxu0 0
        %404 = vmatprep.subr.bf16.mxu0 0
        %405 = vmatpush2.bf16.msra.mxu0 0
        %406 = vmatprep.mubr.bf16.mxu0 0
        %407 = vmatmul.mubr.bf16.gmra.mxu0 %v363
        %v408 = vpop.f32.mrf.mxu0
        %v409 = vadd.f32 %v327, %v408
        %v410 = vpop.f32.mrf.mxu0
        %v411 = vpop.f32.mrf.mxu0
        %v412 = vadd.f32 %v327, %v411
        %v413 = vpop.f32.mrf.mxu0
        %414 = vmatprep.mubr.bf16.mxu0 0
        %415 = vmatmul.mubr.bf16.gmra.mxu0 %v366
        %v416 = vpop.f32.mrf.mxu0
        %v417 = vadd.f32 %v327, %v416
        %v418 = vpop.f32.mrf.mxu0
        %v419 = vpop.f32.mrf.mxu0
        %v420 = vadd.f32 %v327, %v419
        %v421 = vpop.f32.mrf.mxu0
        %422 = vmatprep.mubr.bf16.mxu0 0
        %423 = vmatmul.mubr.bf16.gmra.mxu0 %v369
        %v424 = vpop.f32.mrf.mxu0
        %v425 = vadd.f32 %v327, %v424
        %v426 = vpop.f32.mrf.mxu0
        %v427 = vpop.f32.mrf.mxu0
        %v428 = vadd.f32 %v327, %v427
        %v429 = vpop.f32.mrf.mxu0
        %430 = vmatprep.mubr.bf16.mxu0 0
        %431 = vmatmul.mubr.bf16.gmra.mxu0 %v372
        %v432 = vpop.f32.mrf.mxu0
        %v433 = vadd.f32 %v327, %v432
        %v434 = vpop.f32.mrf.mxu0
        %v435 = vpop.f32.mrf.mxu0
        %v436 = vadd.f32 %v327, %v435
        %v437 = vpop.f32.mrf.mxu0
        %438 = vdwg.mxu0
        %v439 = vmul.f32 %v409, 0.5
        %v440 = vmul.f32 %v412, 0.5
        %v441 = vmul.f32 %v417, 0.5
        %v442 = vmul.f32 %v420, 0.5
        %v443 = vmul.f32 %v425, 0.5
        %v444 = vmul.f32 %v428, 0.5
        %v445 = vmul.f32 %v433, 0.5
        %v446 = vmul.f32 %v436, 0.5
        %v447 = vmul.f32 %v409, 0.044715
        %v448 = vmul.f32 %v412, 0.044715
        %v449 = vmul.f32 %v417, 0.044715
        %v450 = vmul.f32 %v420, 0.044715
        %v451 = vmul.f32 %v425, 0.044715
        %v452 = vmul.f32 %v428, 0.044715
        %v453 = vmul.f32 %v433, 0.044715
        %v454 = vmul.f32 %v436, 0.044715
        %v455 = vmul.f32 %v447, %v409
        %v456 = vmul.f32 %v448, %v412
        %v457 = vmul.f32 %v449, %v417
        %v458 = vmul.f32 %v450, %v420
        %v459 = vmul.f32 %v451, %v425
        %v460 = vmul.f32 %v452, %v428
        %v461 = vmul.f32 %v453, %v433
        %v462 = vmul.f32 %v454, %v436
        %v463 = vmul.f32 %v455, %v409
        %v464 = vmul.f32 %v456, %v412
        %v465 = vmul.f32 %v457, %v417
        %v466 = vmul.f32 %v458, %v420
        %v467 = vmul.f32 %v459, %v425
        %v468 = vmul.f32 %v460, %v428
        %v469 = vmul.f32 %v461, %v433
        %v470 = vmul.f32 %v462, %v436
        %v471 = vadd.f32 %v409, %v463
        %v472 = vadd.f32 %v412, %v464
        %v473 = vadd.f32 %v417, %v465
        %v474 = vadd.f32 %v420, %v466
        %v475 = vadd.f32 %v425, %v467
        %v476 = vadd.f32 %v428, %v468
        %v477 = vadd.f32 %v433, %v469
        %v478 = vadd.f32 %v436, %v470
        %v479 = vmul.f32 %v471, 0.7978846
        %v480 = vmul.f32 %v472, 0.7978846
        %v481 = vmul.f32 %v473, 0.7978846
        %v482 = vmul.f32 %v474, 0.7978846
        %v483 = vmul.f32 %v475, 0.7978846
        %v484 = vmul.f32 %v476, 0.7978846
        %v485 = vmul.f32 %v477, 0.7978846
        %v486 = vmul.f32 %v478, 0.7978846
        %v487 = vtanh.pop %v479
        %v488 = vtanh.pop %v480
        %v489 = vtanh.pop %v481
        %v490 = vtanh.pop %v482
        %v491 = vtanh.pop %v483
        %v492 = vtanh.pop %v484
        %v493 = vtanh.pop %v485
        %v494 = vtanh.pop %v486
        %v495 = vadd.f32 %v487, 1.0
        %v496 = vadd.f32 %v488, 1.0
        %v497 = vadd.f32 %v489, 1.0
        %v498 = vadd.f32 %v490, 1.0
        %v499 = vadd.f32 %v491, 1.0
        %v500 = vadd.f32 %v492, 1.0
        %v501 = vadd.f32 %v493, 1.0
        %v502 = vadd.f32 %v494, 1.0
        %v503 = vmul.f32 %v439, %v495
        %v504 = vmul.f32 %v440, %v496
        %v505 = vmul.f32 %v441, %v497
        %v506 = vmul.f32 %v442, %v498
        %v507 = vmul.f32 %v443, %v499
        %v508 = vmul.f32 %v444, %v500
        %v509 = vmul.f32 %v445, %v501
        %v510 = vmul.f32 %v446, %v502
        %v511 = vld [vmem:[#allocation2] sm:$0xff]
        %v512 = vadd.f32 %v503, %v504
        %v513 = vadd.f32 %v512, %v505
        %v514 = vadd.f32 %v513, %v506
        %v515 = vadd.f32 %v514, %v507
        %v516 = vadd.f32 %v515, %v508
        %v517 = vadd.f32 %v516, %v509
        %v518 = vadd.f32 %v517, %v510
        %v519 = vadd.f32 %v511, %v518
        %520 = vst [vmem:[#allocation2] sm:$0xff] %v519
        // Predicated region
        $region53: #{effnet_simple_encoder_forward.1} parent=47 // pred_check
          %p521 = pneg %p305
        $region54: #{effnet_simple_encoder_forward.1} parent=47 // pred_check_branch
          %523 = sbr.rel (%p521) target = $region56
        $region55: #{effnet_simple_encoder_forward.1} parent=47 // pred_region
          %v524 = vld [vmem:[#allocation2] sm:$0xff]
          %v525 = vrot.slane %v524, 4
          %v526 = vadd.f32 %v524, %v525
          %v527 = vrot.slane %v526, 2
          %v528 = vadd.f32 %v526, %v527
          %v529 = vrot.slane %v528, 1
          %v530 = vadd.f32 %v528, %v529
          %v531 = vmul.f32 %v530, 0.015625
          %v532 = vpack.c.bf16 %v531, %v531
          %v533 = vld [vmem:[%s3] sm:$0xf]
          %v534 = vld [vmem:[%s3 + $0x4] sm:$0xf]
          %v535 = vld [vmem:[%s3 + $0x8] sm:$0xf]
          %v536 = vld [vmem:[%s3 + $0xc] sm:$0xf]
          %v537 = vld [vmem:[%s3 + $0x10] sm:$0xf]
          %v538 = vld [vmem:[%s3 + $0x14] sm:$0xf]
          %v539 = vld [vmem:[%s3 + $0x18] sm:$0xf]
          %v540 = vld [vmem:[%s3 + $0x1c] sm:$0xf]
          %v541 = vld [vmem:[%s3 + $0x20] sm:$0xf]
          %v542 = vld [vmem:[%s3 + $0x24] sm:$0xf]
          %v543 = vld [vmem:[%s3 + $0x28] sm:$0xf]
          %v544 = vld [vmem:[%s3 + $0x2c] sm:$0xf]
          %v545 = vld [vmem:[%s3 + $0x30] sm:$0xf]
          %v546 = vld [vmem:[%s3 + $0x34] sm:$0xf]
          %v547 = vld [vmem:[%s3 + $0x38] sm:$0xf]
          %v548 = vld [vmem:[%s3 + $0x3c] sm:$0xf]
          %v565 = vunpack.c.l.b16 %v533
          %v566 = vunpack.c.l.b16 %v534
          %v567 = vunpack.c.l.b16 %v535
          %v568 = vunpack.c.l.b16 %v536
          %v569 = vunpack.c.l.b16 %v537
          %v570 = vunpack.c.l.b16 %v538
          %v571 = vunpack.c.l.b16 %v539
          %v572 = vunpack.c.l.b16 %v540
          %v573 = vunpack.c.l.b16 %v541
          %v574 = vunpack.c.l.b16 %v542
          %v575 = vunpack.c.l.b16 %v543
          %v576 = vunpack.c.l.b16 %v544
          %v577 = vunpack.c.l.b16 %v545
          %v578 = vunpack.c.l.b16 %v546
          %v579 = vunpack.c.l.b16 %v547
          %v580 = vunpack.c.l.b16 %v548
          %v581 = vpack.c.b16 %v566, %v565
          %v582 = vpack.c.b16 %v568, %v567
          %v583 = vpack.c.b16 %v570, %v569
          %v584 = vpack.c.b16 %v572, %v571
          %v585 = vpack.c.b16 %v574, %v573
          %v586 = vpack.c.b16 %v576, %v575
          %v587 = vpack.c.b16 %v578, %v577
          %v588 = vpack.c.b16 %v580, %v579
          %597 = vmatprep.subr.bf16.mxu0 0
          %598 = vmatpush1.bf16.msra.mxu0 %v588
          %599 = vmatprep.subr.bf16.mxu0 0
          %600 = vmatpush1.bf16.msra.mxu0 %v587
          %601 = vmatprep.subr.bf16.mxu0 0
          %602 = vmatpush1.bf16.msra.mxu0 %v586
          %603 = vmatprep.subr.bf16.mxu0 0
          %604 = vmatpush1.bf16.msra.mxu0 %v585
          %605 = vmatprep.subr.bf16.mxu0 0
          %606 = vmatpush1.bf16.msra.mxu0 %v584
          %607 = vmatprep.subr.bf16.mxu0 0
          %608 = vmatpush1.bf16.msra.mxu0 %v583
          %609 = vmatprep.subr.bf16.mxu0 0
          %610 = vmatpush1.bf16.msra.mxu0 %v582
          %611 = vmatprep.subr.bf16.mxu0 0
          %612 = vmatpush1.bf16.msra.mxu0 %v581
          %613 = vmatprep.subr.bf16.mxu0 0
          %614 = vmatpush2.bf16.msra.mxu0 0
          %615 = vmatprep.subr.bf16.mxu0 0
          %616 = vmatpush2.bf16.msra.mxu0 0
          %617 = vmatprep.subr.bf16.mxu0 0
          %618 = vmatpush2.bf16.msra.mxu0 0
          %619 = vmatprep.subr.bf16.mxu0 0
          %620 = vmatpush2.bf16.msra.mxu0 0
          %621 = vmatprep.subr.bf16.mxu0 0
          %622 = vmatpush2.bf16.msra.mxu0 0
          %623 = vmatprep.subr.bf16.mxu0 0
          %624 = vmatpush2.bf16.msra.mxu0 0
          %625 = vmatprep.subr.bf16.mxu0 0
          %626 = vmatpush2.bf16.msra.mxu0 0
          %627 = vmatprep.subr.bf16.mxu0 0
          %628 = vmatpush2.bf16.msra.mxu0 0
          %629 = vmatprep.mubr.bf16.mxu0 0
          %630 = vmatmul.mubr.bf16.gmra.mxu0 %v532
          %v631 = vpop.f32.mrf.mxu0
          %v632 = vadd.f32 0.0, %v631
          %v633 = vpop.f32.mrf.mxu0
          %v634 = vpop.f32.mrf.mxu0
          %v635 = vpop.f32.mrf.mxu0
          %636 = vdwg.mxu0
          %v637 = vld [vmem:[%s4] sm:$0x1]
          %v638 = vadd.f32 %v632, %v637
          %vm639 = vcmask 1040384
          %v640 = vsel %vm639, %v638, 0.0
          %641 = vadd.xlane.f32.xlu0 %v640
          %v642 = vpop.xlane.xlu0 %641
          %v643 = vrcp.pop 128.0
          %v644 = vmul.f32 %v642, %v643
          %v645 = vsub.f32 %v638, %v644
          %v646 = vmul.f32 %v645, %v645
          %v647 = vsel %vm639, %v646, 0.0
          %648 = vadd.xlane.f32.xlu0 %v647
          %v649 = vpop.xlane.xlu0 %648
          %v650 = vmul.f32 %v649, %v643
          %v651 = vadd.f32 %v650, 1e-05
          %v652 = vrsqrt.pop %v651
          %v653 = vmul.f32 %v645, %v652
          %v654 = vld [vmem:[%s5] sm:$0x1]
          %v655 = vmul.f32 %v653, %v654
          %v656 = vld [vmem:[%s6] sm:$0x1]
          %v657 = vadd.f32 %v655, %v656
          %v658 = vmul.f32 %v657, 0.5
          %v659 = vmul.f32 %v657, 0.044715
          %v660 = vmul.f32 %v659, %v657
          %v661 = vmul.f32 %v660, %v657
          %v662 = vadd.f32 %v657, %v661
          %v663 = vmul.f32 %v662, 0.7978846
          %v664 = vtanh.pop %v663
          %v665 = vadd.f32 %v664, 1.0
          %v666 = vmul.f32 %v658, %v665
          %667 = vst [vmem:[%s293] sm:$0x1] %v666
        $region56: #{effnet_simple_encoder_forward.1} parent=47 // pred_fallthru
          _
        %s668 = sand.u32 %s195, 1
        %s669 = scalar_lea.sflag [#allocation4], %s668
        %s670 = sand.u32 %s195, 1
        %s671 = scalar_lea.vmem [#allocation3], %s670
        // Predicated region
        $region57: #{effnet_simple_encoder_forward.1} parent=47 // pred_check
          %p672 = pneg %p205
        $region58: #{effnet_simple_encoder_forward.1} parent=47 // pred_check_branch
          %674 = sbr.rel (%p672) target = $region60
        $region59: #{effnet_simple_encoder_forward.1} parent=47 // pred_region
          %s676 = ssub.s32 16, 16
          %677 = vsyncadd %s669, %s676
          %s678 = smul.addr %s25, 16
          %s679 = scalar_lea.hbm %s7, %s678
          %s681 = sshll.u32 %s671, 4
          %s682 = int_to_ptr.vmem [resolvable:$true] %s681
          %684 = dma.vmem_to_hbm [thread:$0]  %s682, 16, %s679, %s669
        $region60: #{effnet_simple_encoder_forward.1} parent=47 // pred_fallthru
          _
      $region48: #{effnet_simple_encoder_forward.1} parent=5 // pred_fallthru
        _
      %p685 = scmp.le.s32.totalorder 2, %s16
      // Predicated region
      $region61: #{effnet_simple_encoder_forward.1} parent=5 // pred_check
        %p686 = pneg %p685
      $region62: #{effnet_simple_encoder_forward.1} parent=5 // pred_check_branch
        %688 = sbr.rel (%p686) target = $region64
      $region63: #{effnet_simple_encoder_forward.1} parent=5 // pred_region
        %s689 = ssub.s32 %s16, 2
        // Predicated region
        $region65: #{effnet_simple_encoder_forward.1} parent=63 // pred_check
          %p690 = pneg %p211
        $region66: #{effnet_simple_encoder_forward.1} parent=63 // pred_check_branch
          %692 = sbr.rel (%p690) target = $region68
        $region67: #{effnet_simple_encoder_forward.1} parent=63 // pred_region
          %s693 = sand.u32 %s196, 1
          %s694 = scalar_lea.sflag [#allocation4], %s693
          %s695 = sand.u32 %s196, 1
          %s696 = scalar_lea.vmem [#allocation3], %s695
          %697 = dma.done %s694, 16
        $region68: #{effnet_simple_encoder_forward.1} parent=63 // pred_fallthru
          _
      $region64: #{effnet_simple_encoder_forward.1} parent=5 // pred_fallthru
        _
    $region6: #{effnet_simple_encoder_forward.1} parent=1 // loop_footer
      %s20 = sadd.s32 1, %s16
    $region7: #{effnet_simple_encoder_forward.1} parent=1 // loop_footer_branch
      %15 = sbr.rel target = $region3
    $region8: #{effnet_simple_encoder_forward.1} parent=1 // loop_exit
      _
    %698 = vsyncpa [#allocation4], 1
    %s699 = scalar_lea.sflag [#allocation4], 1
    %700 = vsyncpa %s699, 1

</llo_original>
